<compile_context>
chip_gen: v6e
topology: v6e:2x2x1
jax: 0.10.0
libtpu: 0.0.40
codegen_flags: <defaults>
</compile_context>

<pallas_src>
import functools
import itertools

import jax
import jax.numpy as jnp
from jax.experimental import pallas as pl
from jax.experimental.pallas import tpu as pltpu


def _round_up(v, m):
    return (v + m - 1) // m * m


def _vmem_capacity_bytes():
    """Physical per-core VMEM; conservative fallback if the query fails."""
    try:
        info = pltpu.get_tpu_info()
        cap = getattr(info, "vmem_capacity_bytes", None)
        if cap:
            return int(cap)
    except Exception:
        pass
    return 64 * 1024 * 1024  # v7x-sized (smallest current gen) -> safe everywhere


def _block_vmem_bytes(shape, itemsize):
    """VMEM footprint of ONE pipeline buffer of a block ((8,128) padded)."""
    if len(shape) == 1:
        return _round_up(int(shape[0]), 128) * itemsize
    lead = 1
    for d in shape[:-2]:
        lead *= int(d)
    return (lead * _round_up(int(shape[-2]), 8) *
            _round_up(int(shape[-1]), 128) * itemsize)


def _working_set_bytes(blocks):
    # x2: Pallas double-buffers every pipelined input/output block.
    return sum(2 * _block_vmem_bytes(s, b) for s, b in blocks)


def _maybe_pad(a, pads):
    # Skip the XLA pad pass entirely when no padding is actually needed.
    if any(lo or hi for lo, hi in pads):
        return jnp.pad(a, pads)
    return a


# ---------------------------------------------------------------------------
# Kernels
# ---------------------------------------------------------------------------

def _member_acc_kernel(x_ref, w_ref, b_ref, o_ref, *, inv_m):
    """grid = (M,): accumulate per-member GEMMs into the f32 output block.

    out = (1/M) * sum_m x @ W_m + mean_m(b_m).  The output block's index map
    is constant, so it stays VMEM-resident across the grid -> no scratch.
    """
    m = pl.program_id(0)

    @pl.when(m == 0)
    def _():
        o_ref[...] = jnp.zeros_like(o_ref)

    o_ref[...] += jnp.dot(x_ref[...], w_ref[0],
                          preferred_element_type=jnp.float32)

    @pl.when(m == pl.num_programs(0) - 1)
    def _():
        o_ref[...] = o_ref[...] * inv_m + b_ref[...]


def _avg_gemm_kernel(x_ref, w_ref, b_ref, o_ref):
    """2D grid (batch/label tiles): one GEMM per output tile, no branches."""
    o_ref[...] = (
        jnp.dot(x_ref[...], w_ref[...], preferred_element_type=jnp.float32)
        + b_ref[...]
    ).astype(o_ref.dtype)


def _avg_gemm_ktiled_kernel(x_ref, w_ref, b_ref, o_ref):
    """3D grid (batch/label tiles, K tiles): K is the trailing reduction."""
    k = pl.program_id(2)

    @pl.when(k == 0)
    def _():
        o_ref[...] = jnp.broadcast_to(b_ref[...], o_ref.shape)

    o_ref[...] += jnp.dot(x_ref[...], w_ref[...],
                          preferred_element_type=jnp.float32)


# ---------------------------------------------------------------------------
# Wrapper
# ---------------------------------------------------------------------------

@functools.partial(jax.jit,
                   static_argnames=("compute_dtype", "vmem_budget_bytes"))
def ensemble_average(x, weights, biases, *, compute_dtype=None,
                     vmem_budget_bytes=None):
    """x: [B, H], weights: [M, H, L], biases: [M, 1, L] -> [B, L] float32.

    Computes mean_m(x @ W_m + b_m)  (the 'average' ensemble mode).
    compute_dtype (e.g. jnp.bfloat16) optionally downcasts the GEMM operands
    (accumulation stays float32).  vmem_budget_bytes overrides the VMEM budget
    used for tile selection (mainly to exercise the tiled paths in tests).
    """
    B, H = x.shape
    M, H2, L = weights.shape
    assert H2 == H

    x_dt = jnp.dtype(compute_dtype) if compute_dtype is not None else x.dtype
    w_dt = (jnp.dtype(compute_dtype) if compute_dtype is not None
            else weights.dtype)
    xb, wb = x_dt.itemsize, w_dt.itemsize
    x_in = x.astype(x_dt)

    # Member-averaged bias, hoisted out of the kernels (tiny: M*L elements).
    b_mean = jnp.mean(biases.astype(jnp.float32).reshape(M, L), axis=0,
                      keepdims=True)                                  # (1, L)

    cap = _vmem_capacity_bytes()
    budget = vmem_budget_bytes if vmem_budget_bytes is not None else cap
    usable = int(0.7 * budget)        # leave headroom for compiler scratch

    B_pad = _round_up(B, 8)

    # -----------------------------------------------------------------------
    # Path A: single batch tile -> stream each member's weights exactly once
    # and accumulate per-member GEMMs into the f32 output block.  Output is
    # full-extent L (tiny vs. the weight stream), so the [M, H, L] weights are
    # never padded / rewritten in HBM.
    # -----------------------------------------------------------------------
    ws_member = _working_set_bytes([
        ((B_pad, H), xb), ((1, H, L), wb), ((1, L), 4), ((B_pad, L), 4)])
    if B_pad <= 512 and ws_member <= usable:
        x_p = _maybe_pad(x_in, ((0, B_pad - B), (0, 0)))
        w_in = weights.astype(w_dt)
        vmem_limit = int(min(cap - (4 << 20),
                             max(2 * ws_member + (4 << 20), 16 << 20)))
        out = pl.pallas_call(
            functools.partial(_member_acc_kernel, inv_m=1.0 / M),
            out_shape=jax.ShapeDtypeStruct((B_pad, L), jnp.float32),
            grid_spec=pltpu.PrefetchScalarGridSpec(
                num_scalar_prefetch=0,
                grid=(M,),
                in_specs=[
                    pl.BlockSpec((B_pad, H), lambda m: (0, 0)),    # resident
                    pl.BlockSpec((1, H, L), lambda m: (m, 0, 0)),  # streamed
                    pl.BlockSpec((1, L), lambda m: (0, 0)),        # resident
                ],
                out_specs=pl.BlockSpec((B_pad, L), lambda m: (0, 0)),
            ),
            compiler_params=pltpu.CompilerParams(
                dimension_semantics=("arbitrary",),
                vmem_limit_bytes=vmem_limit,
            ),
        )(x_p, w_in, b_mean)
        return out[:B, :]

    # -----------------------------------------------------------------------
    # Path B: pre-average the member weights once (single HBM pass over
    # M*H*L), then a plain tiled GEMM  out = x @ mean_m(W_m) + mean_m(b_m).
    # -----------------------------------------------------------------------
    w_mean = jnp.mean(weights, axis=0, dtype=jnp.float32).astype(w_dt)  # (H,L)

    L_pad = _round_up(L, 128)
    tl_cands = sorted({min(c, L_pad) for c in (512, 256, 128)}, reverse=True)
    tb_cands = sorted({min(c, B_pad) for c in (512, 256, 128, 64, 32, 16, 8)},
                      reverse=True)
    tk_cands = [H] + [c for c in (2048, 1024, 512, 256, 128) if c < H]

    def _ws(tb, tl, tk):
        return _working_set_bytes([
            ((tb, tk), xb), ((tk, tl), wb), ((1, tl), 4), ((tb, tl), 4)])

    # Preference: full H (no K axis), big lane-dense label tiles, big batch
    # tiles; shrink K first, then tb, then tl until the working set fits.
    for tl, tb, tk in itertools.product(tl_cands, tb_cands, tk_cands):
        if _ws(tb, tl, tk) <= usable:
            break
    ws = _ws(tb, tl, tk)

    nkt = _round_up(H, tk) // tk
    H_pad = H if nkt == 1 else _round_up(H, tk)
    L_pad2 = _round_up(L_pad, tl)
    B_pad2 = _round_up(B_pad, tb)
    nbt = B_pad2 // tb
    nlt = L_pad2 // tl

    # Only the small averaged weights / bias / x get padded (conditionally).
    x_p = _maybe_pad(x_in, ((0, B_pad2 - B), (0, H_pad - H)))
    w_p = _maybe_pad(w_mean, ((0, H_pad - H), (0, L_pad2 - L)))
    b_p = _maybe_pad(b_mean, ((0, 0), (0, L_pad2 - L)))

    # Grid order: stream the bigger operand from HBM only once.  Batch-outer
    # re-fetches W once per batch tile; label-outer re-fetches x once per
    # label tile (matters most on v5e's low HBM bandwidth).
    w_restream = nbt * H_pad * L_pad2 * wb
    x_restream = nlt * B_pad2 * H_pad * xb
    label_outer = w_restream > x_restream

    if nkt == 1:
        kernel = _avg_gemm_kernel
        if label_outer:
            grid = (nlt, nbt)
            x_map = lambda j, i: (i, 0)
            w_map = lambda j, i: (0, j)
            b_map = lambda j, i: (0, j)
            o_map = lambda j, i: (i, j)
        else:
            grid = (nbt, nlt)
            x_map = lambda i, j: (i, 0)
            w_map = lambda i, j: (0, j)
            b_map = lambda i, j: (0, j)
            o_map = lambda i, j: (i, j)
        x_spec = pl.BlockSpec((tb, H_pad), x_map)
        w_spec = pl.BlockSpec((H_pad, tl), w_map)
        dims = ("parallel", "parallel")
    else:
        kernel = _avg_gemm_ktiled_kernel
        if label_outer:
            grid = (nlt, nbt, nkt)
            x_map = lambda j, i, k: (i, k)
            w_map = lambda j, i, k: (k, j)
            b_map = lambda j, i, k: (0, j)
            o_map = lambda j, i, k: (i, j)
        else:
            grid = (nbt, nlt, nkt)
            x_map = lambda i, j, k: (i, k)
            w_map = lambda i, j, k: (k, j)
            b_map = lambda i, j, k: (0, j)
            o_map = lambda i, j, k: (i, j)
        x_spec = pl.BlockSpec((tb, tk), x_map)
        w_spec = pl.BlockSpec((tk, tl), w_map)
        dims = ("parallel", "parallel", "arbitrary")

    vmem_limit = int(min(cap - (4 << 20), max(2 * ws + (4 << 20), 16 << 20)))

    out = pl.pallas_call(
        kernel,
        out_shape=jax.ShapeDtypeStruct((B_pad2, L_pad2), jnp.float32),
        grid_spec=pltpu.PrefetchScalarGridSpec(
            num_scalar_prefetch=0,
            grid=grid,
            in_specs=[x_spec, w_spec, pl.BlockSpec((1, tl), b_map)],
            out_specs=pl.BlockSpec((tb, tl), o_map),
        ),
        compiler_params=pltpu.CompilerParams(
            dimension_semantics=dims,
            vmem_limit_bytes=vmem_limit,
        ),
    )(x_p, w_p, b_p)

    return out[:B, :L]


if __name__ == "__main__":
    def reference(x, w, b):
        scores = jnp.einsum("bh,mhl->mbl", x, w,
                            precision=jax.lax.Precision.HIGHEST) + b
        return jnp.mean(scores, axis=0)

    key = jax.random.PRNGKey(0)

    # (B, H, L, M, vmem-budget override).  Shapes stay small; the budget
    # override only steers tile selection so every kernel path is exercised.
    cases = [
        (8, 32, 8, 3, None),         # Path A: member-accumulate (1 batch tile)
        (640, 64, 8, 2, None),       # Path B: plain GEMM, 2 batch tiles
        (64, 256, 384, 2, 1 << 20),  # Path B: K-tiled / label-outer variant
    ]
    for case_key, (B, H, L, M, budget) in zip(
            jax.random.split(key, len(cases)), cases):
        kx, kw, kb = jax.random.split(case_key, 3)
        x = jax.random.normal(kx, (B, H), dtype=jnp.float32)
        weights = jax.random.normal(kw, (M, H, L), dtype=jnp.float32) * 0.1
        biases = jax.random.normal(kb, (M, 1, L), dtype=jnp.float32) * 0.1

        out = jax.block_until_ready(
            ensemble_average(x, weights, biases, vmem_budget_bytes=budget))
        ref = reference(x, weights, biases)
        assert out.shape == (B, L)
        err = float(jnp.max(jnp.abs(out - ref)))
        assert jnp.allclose(out, ref, atol=1e-4, rtol=1e-4), (
            f"case (B={B},H={H},L={L},M={M}): max abs err = {err}")

    print("KERNEL_OK")
</pallas_src>

<mosaic_0001>
module attributes {stable_mosaic.version = 11 : i64} {
  func.func @_member_acc_kernel(%arg0: i32, %arg1: memref<8x32xf32, #tpu.memory_space<vmem>>, %arg2: memref<1x32x8xf32, #tpu.memory_space<vmem>>, %arg3: memref<1x8xf32, #tpu.memory_space<vmem>>, %arg4: memref<8x8xf32, #tpu.memory_space<vmem>>) attributes {dimension_semantics = [#tpu.dimension_semantics<arbitrary>], iteration_bounds = array<i64: 3>, scalar_prefetch = 0 : i64, scratch_operands = 0 : i64, tpu.core_type = #tpu.core_type<tc>, window_params = [{pipeline_mode = #tpu.pipeline_mode<synchronous>, transform_indices = @transform_0, window_bounds = array<i64: 8, 32>}, {transform_indices = @transform_1, window_bounds = array<i64: 1, 32, 8>}, {pipeline_mode = #tpu.pipeline_mode<synchronous>, transform_indices = @transform_2, window_bounds = array<i64: 1, 8>}, {pipeline_mode = #tpu.pipeline_mode<synchronous>, transform_indices = @transform_3, window_bounds = array<i64: 8, 8>}]} {
    %c0_i32 = arith.constant 0 : i32
    %0 = arith.cmpi eq, %arg0, %c0_i32 : i32
    %1 = arith.extui %0 : i1 to i32
    %c0_i32_0 = arith.constant 0 : i32
    %2 = arith.cmpi ne, %1, %c0_i32_0 : i32
    scf.if %2 {
      %cst_10 = arith.constant 0.000000e+00 : f32
      %13 = vector.broadcast %cst_10 : f32 to vector<8x8xf32>
      %c0_11 = arith.constant 0 : index
      %c0_12 = arith.constant 0 : index
      %14 = vector.load %arg4[%c0_11, %c0_12] : memref<8x8xf32, #tpu.memory_space<vmem>>, vector<8x8xf32>
      tpu.vector_store %arg4[%c0_11, %c0_12], %13 {strides = array<i32>} : memref<8x8xf32, #tpu.memory_space<vmem>>, vector<8x8xf32>,
    } else {
    }
    %c0 = arith.constant 0 : index
    %c0_1 = arith.constant 0 : index
    %3 = vector.load %arg4[%c0, %c0_1] : memref<8x8xf32, #tpu.memory_space<vmem>>, vector<8x8xf32>
    %c0_2 = arith.constant 0 : index
    %c0_3 = arith.constant 0 : index
    %4 = vector.load %arg1[%c0_2, %c0_3] : memref<8x32xf32, #tpu.memory_space<vmem>>, vector<8x32xf32>
    %c0_4 = arith.constant 0 : index
    %c0_5 = arith.constant 0 : index
    %c0_6 = arith.constant 0 : index
    %5 = vector.load %arg2[%c0_4, %c0_5, %c0_6] : memref<1x32x8xf32, #tpu.memory_space<vmem>>, vector<1x32x8xf32>
    %6 = vector.shape_cast %5 : vector<1x32x8xf32> to vector<32x8xf32>
    %cst = arith.constant dense<0.000000e+00> : vector<8x8xf32>
    %7 = tpu.matmul %4, %6, %cst {dimension_numbers = #tpu.dot_dimension_numbers<[1], [0], [0], [1], [0, 0, 1, 1], [], []>} : vector<8x32xf32>, vector<32x8xf32>, vector<8x8xf32> -> vector<8x8xf32>
    %8 = arith.addf %3, %7 : vector<8x8xf32>
    %c0_7 = arith.constant 0 : index
    %c0_8 = arith.constant 0 : index
    %9 = vector.load %arg4[%c0_7, %c0_8] : memref<8x8xf32, #tpu.memory_space<vmem>>, vector<8x8xf32>
    tpu.vector_store %arg4[%c0_7, %c0_8], %8 {strides = array<i32>} : memref<8x8xf32, #tpu.memory_space<vmem>>, vector<8x8xf32>,
    %c2_i32 = arith.constant 2 : i32
    %10 = arith.cmpi eq, %arg0, %c2_i32 : i32
    %11 = arith.extui %10 : i1 to i32
    %c0_i32_9 = arith.constant 0 : i32
    %12 = arith.cmpi ne, %11, %c0_i32_9 : i32
    scf.if %12 {
      %c0_10 = arith.constant 0 : index
      %c0_11 = arith.constant 0 : index
      %13 = vector.load %arg4[%c0_10, %c0_11] : memref<8x8xf32, #tpu.memory_space<vmem>>, vector<8x8xf32>
      %cst_12 = arith.constant 0.333333343 : f32
      %14 = vector.broadcast %cst_12 : f32 to vector<8x8xf32>
      %15 = arith.mulf %13, %14 : vector<8x8xf32>
      %c0_13 = arith.constant 0 : index
      %c0_14 = arith.constant 0 : index
      %16 = vector.load %arg3[%c0_13, %c0_14] : memref<1x8xf32, #tpu.memory_space<vmem>>, vector<1x8xf32>
      %17 = vector.broadcast %16 : vector<1x8xf32> to vector<8x8xf32>
      %18 = arith.addf %15, %17 : vector<8x8xf32>
      %c0_15 = arith.constant 0 : index
      %c0_16 = arith.constant 0 : index
      %19 = vector.load %arg4[%c0_15, %c0_16] : memref<8x8xf32, #tpu.memory_space<vmem>>, vector<8x8xf32>
      tpu.vector_store %arg4[%c0_15, %c0_16], %18 {strides = array<i32>} : memref<8x8xf32, #tpu.memory_space<vmem>>, vector<8x8xf32>,
    } else {
    }
    return
  }
  func.func @transform_0(%arg0: i32) -> (i32, i32) {
    %c0_i32 = arith.constant 0 : i32
    %c0_i32_0 = arith.constant 0 : i32
    %c0_i32_1 = arith.constant 0 : i32
    return %c0_i32, %c0_i32_0 : i32, i32
  }
  func.func @transform_1(%arg0: i32) -> (i32, i32, i32) {
    %c0_i32 = arith.constant 0 : i32
    %c0_i32_0 = arith.constant 0 : i32
    %c0_i32_1 = arith.constant 0 : i32
    return %arg0, %c0_i32, %c0_i32_0 : i32, i32, i32
  }
  func.func @transform_2(%arg0: i32) -> (i32, i32) {
    %c0_i32 = arith.constant 0 : i32
    %c0_i32_0 = arith.constant 0 : i32
    %c0_i32_1 = arith.constant 0 : i32
    return %c0_i32, %c0_i32_0 : i32, i32
  }
  func.func @transform_3(%arg0: i32) -> (i32, i32) {
    %c0_i32 = arith.constant 0 : i32
    %c0_i32_0 = arith.constant 0 : i32
    %c0_i32_1 = arith.constant 0 : i32
    return %c0_i32, %c0_i32_0 : i32, i32
  }
}

</mosaic_0001>

<llo_original>
// kernel: ensemble_average.1
$region0: #{ensemble_average.1}
  #allocation0 [shape = 'u32[]', space=smem, size = 0x4, offset = 0x4, fixed_abs, tag = 'smem constant byte address 0x4 - core index']
  #allocation1 [shape = 'u32[144,128]{1,0:T(1,128)}', space=vmem, size = 0x12000, scoped, tag = 'internal scratch']
  %s0 = inlined_call_operand.vmem [shape: f32[8,32], index: 0, kind: input, shape index: {}]
  %s1 = inlined_call_operand.vmem [shape: f32[3,32,8], index: 1, kind: input, shape index: {}]
  %s2 = inlined_call_operand.vmem [shape: f32[1,8], index: 2, kind: input, shape index: {}]
  %s3 = inlined_call_operand.hbm [shape: f32[8,8], index: 3, kind: output, shape index: {}]
  %s4 = sld [smem:[#allocation0]]
  $region53: #{ensemble_average.1} parent=0
    _
  %s6 = ssub.s32 1, %s4
  %s7 = scalar_select 0, %s6, %s4
  $region1: #{ensemble_average.1} parent=0
    #allocation2 [shape = 'u8[4096]{0}', space=vmem, size = 0x1000, scoped, tag = 'output window, operand 0, single buffered']
    #allocation3 [shape = 's32[2]{0}', space=sflag, size = 0x8, scoped, tag = 'scoped memory for ensemble_average.1']
    %8 = vsyncpa [#allocation3], 0
    loop: start=0, step=1, limit=5
    $region2: #{ensemble_average.1} parent=1 // loop_pre_header
      _
    $region3: #{ensemble_average.1} parent=1 // loop_header
      %s10 = sphi 0, %s14
      %p11 = scmp.ge.s32.totalorder %s10, 5
      %s18 = sphi 0, %s18
      %s20 = sphi 0, %s18
      %s21 = sphi 0, %s20
      %s35 = sphi 0, %s21
      %s41 = sphi 0, %s43
      %s44 = sphi 0, %s41
      %s45 = sphi 0, %s44
      %s61 = sphi 0, %s45
      %s65 = sphi 0, %s65
      %s67 = sphi 0, %s65
      %s68 = sphi 0, %s67
      %s82 = sphi 0, %s68
      %s86 = sphi 0, %s86
      %s88 = sphi 0, %s86
      %s89 = sphi 0, %s88
      %s103 = sphi 0, %s89
    $region4: #{ensemble_average.1} parent=1 // loop_header_branch
      %13 = sbr.rel (%p11) target = $region8
    $region5: #{ensemble_average.1} parent=1 // loop_body
      %s15 = ssub.s32 %s10, 1
      %s16 = ssub.s32 %s10, 2
      %s17 = sadd.s32 %s10, 1
      %s19 = sadd.s32 %s18, 1
      %p22 = scmp.eq.s32.totalorder %s10, 2
      %p23 = scmp.ne.s32.totalorder %s18, %s20
      %p24 = scmp.eq.s32.totalorder %s10, 0
      %p25 = por %p23, %p24
      %p26 = scmp.ne.s32.totalorder %s18, %s20
      %p27 = scmp.eq.s32.totalorder %s15, 2
      %p28 = por %p26, %p27
      %p29 = scmp.ne.s32.totalorder %s20, %s21
      %p30 = scmp.eq.s32.totalorder %s15, 0
      %p31 = por %p29, %p30
      %p32 = scmp.ne.s32.totalorder %s20, %s21
      %p33 = scmp.eq.s32.totalorder %s16, 2
      %p34 = por %p32, %p33
      %p36 = scmp.ne.s32.totalorder %s21, %s35
      %p37 = scmp.eq.s32.totalorder %s16, 0
      %p38 = por %p36, %p37
      %s39 = ssub.s32 %s10, %s17
      %p40 = scmp.eq.s32.totalorder %s39, 0
      %s42 = sadd.s32 %s41, 1
      %s43 = scalar_select %p40, %s41, %s42
      %p46 = pneg %p40
      %p47 = scmp.eq.s32.totalorder %s10, 2
      %p48 = por %p46, %p47
      %p49 = scmp.ne.s32.totalorder %s41, %s44
      %p50 = scmp.eq.s32.totalorder %s10, 0
      %p51 = por %p49, %p50
      %p52 = scmp.ne.s32.totalorder %s41, %s44
      %p53 = scmp.eq.s32.totalorder %s15, 2
      %p54 = por %p52, %p53
      %p55 = scmp.ne.s32.totalorder %s44, %s45
      %p56 = scmp.eq.s32.totalorder %s15, 0
      %p57 = por %p55, %p56
      %p58 = scmp.ne.s32.totalorder %s44, %s45
      %p59 = scmp.eq.s32.totalorder %s16, 2
      %p60 = por %p58, %p59
      %p62 = scmp.ne.s32.totalorder %s45, %s61
      %p63 = scmp.eq.s32.totalorder %s16, 0
      %p64 = por %p62, %p63
      %s66 = sadd.s32 %s65, 1
      %p69 = scmp.eq.s32.totalorder %s10, 2
      %p70 = scmp.ne.s32.totalorder %s65, %s67
      %p71 = scmp.eq.s32.totalorder %s10, 0
      %p72 = por %p70, %p71
      %p73 = scmp.ne.s32.totalorder %s65, %s67
      %p74 = scmp.eq.s32.totalorder %s15, 2
      %p75 = por %p73, %p74
      %p76 = scmp.ne.s32.totalorder %s67, %s68
      %p77 = scmp.eq.s32.totalorder %s15, 0
      %p78 = por %p76, %p77
      %p79 = scmp.ne.s32.totalorder %s67, %s68
      %p80 = scmp.eq.s32.totalorder %s16, 2
      %p81 = por %p79, %p80
      %p83 = scmp.ne.s32.totalorder %s68, %s82
      %p84 = scmp.eq.s32.totalorder %s16, 0
      %p85 = por %p83, %p84
      %s87 = sadd.s32 %s86, 1
      %p90 = scmp.eq.s32.totalorder %s10, 2
      %p91 = scmp.ne.s32.totalorder %s86, %s88
      %p92 = scmp.eq.s32.totalorder %s10, 0
      %p93 = por %p91, %p92
      %p94 = scmp.ne.s32.totalorder %s86, %s88
      %p95 = scmp.eq.s32.totalorder %s15, 2
      %p96 = por %p94, %p95
      %p97 = scmp.ne.s32.totalorder %s88, %s89
      %p98 = scmp.eq.s32.totalorder %s15, 0
      %p99 = por %p97, %p98
      %p100 = scmp.ne.s32.totalorder %s88, %s89
      %p101 = scmp.eq.s32.totalorder %s16, 2
      %p102 = por %p100, %p101
      %p104 = scmp.ne.s32.totalorder %s89, %s103
      %p105 = scmp.eq.s32.totalorder %s16, 0
      %p106 = por %p104, %p105
      %p107 = scmp.le.s32.totalorder 1, %s10
      %p108 = scmp.lt.s32.totalorder %s10, 4
      %p109 = pnand %p107, %p108
      %p110 = pneg %p109
      // Predicated region
      $region9: #{ensemble_average.1} parent=5 // pred_check
        _
      $region10: #{ensemble_average.1} parent=5 // pred_check_branch
        %112 = sbr.rel (%p109) target = $region12
      $region11: #{ensemble_average.1} parent=5 // pred_region
        %s113 = ssub.s32 %s10, 1
        // Predicated region
        $region13: #{ensemble_average.1} parent=11 // pred_check
          %p114 = pneg %p31
        $region14: #{ensemble_average.1} parent=11 // pred_check_branch
          %116 = sbr.rel (%p114) target = $region16
        $region15: #{ensemble_average.1} parent=11 // pred_region
          _
        $region16: #{ensemble_average.1} parent=11 // pred_fallthru
          _
        // Predicated region
        $region17: #{ensemble_average.1} parent=11 // pred_check
          %p117 = pneg %p78
        $region18: #{ensemble_average.1} parent=11 // pred_check_branch
          %119 = sbr.rel (%p117) target = $region20
        $region19: #{ensemble_average.1} parent=11 // pred_region
          _
        $region20: #{ensemble_average.1} parent=11 // pred_fallthru
          _
      $region12: #{ensemble_average.1} parent=5 // pred_fallthru
        _
      %p120 = scmp.lt.s32.totalorder %s10, 3
      // Predicated region
      $region21: #{ensemble_average.1} parent=5 // pred_check
        %p121 = pneg %p120
      $region22: #{ensemble_average.1} parent=5 // pred_check_branch
        %123 = sbr.rel (%p121) target = $region24
      $region23: #{ensemble_average.1} parent=5 // pred_region
        // Predicated region
        $region25: #{ensemble_average.1} parent=23 // pred_check
          %p124 = pneg %p51
        $region26: #{ensemble_average.1} parent=23 // pred_check_branch
          %126 = sbr.rel (%p124) target = $region28
        $region27: #{ensemble_average.1} parent=23 // pred_region
          %p127 = scmp.lt.s32.totalorder %s10, 2
          %s128 = scalar_select %p127, %s10, 2
          %s129 = smul.addr %s128, 4
          %s130 = smul.addr %s129, 8
          %s131 = scalar_lea.vmem %s1, %s130
        $region28: #{ensemble_average.1} parent=23 // pred_fallthru
          _
      $region24: #{ensemble_average.1} parent=5 // pred_fallthru
        _
      %p132 = scmp.le.s32.totalorder 1, %s10
      %p133 = scmp.lt.s32.totalorder %s10, 4
      %p134 = pnand %p132, %p133
      %p135 = pneg %p134
      // Predicated region
      $region29: #{ensemble_average.1} parent=5 // pred_check
        _
      $region30: #{ensemble_average.1} parent=5 // pred_check_branch
        %137 = sbr.rel (%p134) target = $region32
      $region31: #{ensemble_average.1} parent=5 // pred_region
        %s138 = ssub.s32 %s10, 1
        %p139 = pneg %p31
        %p140 = pneg %p28
        %p141 = scmp.lt.s32.totalorder %s15, 2
        %s142 = scalar_select %p141, %s15, 2
        %s143 = smul.addr %s142, 4
        %s144 = smul.addr %s143, 8
        %s145 = scalar_lea.vmem %s1, %s144
        %p146 = pneg %p57
        %p147 = pneg %p54
        %p148 = pneg %p78
        %p149 = pneg %p75
        %p150 = pneg %p99
        %p151 = pneg %p96
        %p152 = scmp.lt.s32.totalorder %s15, 2
        %s153 = scalar_select %p152, %s15, 2
        %s154 = smul.addr %s153, 4
        %s155 = smul.addr %s154, 8
        %s156 = scalar_lea.vmem %s1, %s155
        %p157 = scmp.eq.s32.totalorder %s15, 0
        // Predicated region
        $region33: #{ensemble_average.1} parent=31 // pred_check
          %p158 = pneg %p157
        $region34: #{ensemble_average.1} parent=31 // pred_check_branch
          %160 = sbr.rel (%p158) target = $region36
        $region35: #{ensemble_average.1} parent=31 // pred_region
          %vm161 = vcmask 64512
          %162 = vst.msk [vmem:[#allocation2] sm:$0xff] %vm161, 0.0
        $region36: #{ensemble_average.1} parent=31 // pred_fallthru
          _
        %v163 = vld [vmem:[#allocation2] sm:$0xff]
        %v164 = vld [vmem:[%s0] sm:$0xff]
        %v165 = vld [vmem:[%s156] sm:$0xff]
        %v166 = vld [vmem:[%s156 + $0x8] sm:$0xff]
        %v167 = vld [vmem:[%s156 + $0x10] sm:$0xff]
        %v168 = vld [vmem:[%s156 + $0x18] sm:$0xff]
        %vm169 = vcmask 261120
        %v171 = vsel %vm169, %v164, 0
        %173 = vmatprep.subr.mxu0 0.0
        %174 = vmatpush1.msra.mxu0 0.0
        %175 = vmatprep.subr.mxu0 0.0
        %176 = vmatpush1.msra.mxu0 0.0
        %177 = vmatprep.subr.mxu0 0.0
        %178 = vmatpush1.msra.mxu0 0.0
        %179 = vmatprep.subr.mxu0 0.0
        %180 = vmatpush1.msra.mxu0 0.0
        %181 = vmatprep.subr.mxu0 0.0
        %182 = vmatpush1.msra.mxu0 0.0
        %183 = vmatprep.subr.mxu0 0.0
        %184 = vmatpush1.msra.mxu0 0.0
        %185 = vmatprep.subr.mxu0 0.0
        %186 = vmatpush1.msra.mxu0 0.0
        %187 = vmatprep.subr.mxu0 0.0
        %188 = vmatpush1.msra.mxu0 0.0
        %189 = vmatprep.subr.mxu0 0.0
        %190 = vmatpush1.msra.mxu0 0.0
        %191 = vmatprep.subr.mxu0 0.0
        %192 = vmatpush1.msra.mxu0 0.0
        %193 = vmatprep.subr.mxu0 0.0
        %194 = vmatpush1.msra.mxu0 0.0
        %195 = vmatprep.subr.mxu0 0.0
        %196 = vmatpush1.msra.mxu0 0.0
        %197 = vmatprep.subr.mxu0 0.0
        %198 = vmatpush1.msra.mxu0 %v168
        %199 = vmatprep.subr.mxu0 0.0
        %200 = vmatpush1.msra.mxu0 %v167
        %201 = vmatprep.subr.mxu0 0.0
        %202 = vmatpush1.msra.mxu0 %v166
        %203 = vmatprep.subr.mxu0 0.0
        %204 = vmatpush1.msra.mxu0 %v165
        %205 = vmatprep.subr.mxu0 0.0
        %206 = vmatpush2.msra.mxu0 0.0
        %207 = vmatprep.subr.mxu0 0.0
        %208 = vmatpush2.msra.mxu0 0.0
        %209 = vmatprep.subr.mxu0 0.0
        %210 = vmatpush2.msra.mxu0 0.0
        %211 = vmatprep.subr.mxu0 0.0
        %212 = vmatpush2.msra.mxu0 0.0
        %213 = vmatprep.subr.mxu0 0.0
        %214 = vmatpush2.msra.mxu0 0.0
        %215 = vmatprep.subr.mxu0 0.0
        %216 = vmatpush2.msra.mxu0 0.0
        %217 = vmatprep.subr.mxu0 0.0
        %218 = vmatpush2.msra.mxu0 0.0
        %219 = vmatprep.subr.mxu0 0.0
        %220 = vmatpush2.msra.mxu0 0.0
        %221 = vmatprep.subr.mxu0 0.0
        %222 = vmatpush2.msra.mxu0 0.0
        %223 = vmatprep.subr.mxu0 0.0
        %224 = vmatpush2.msra.mxu0 0.0
        %225 = vmatprep.subr.mxu0 0.0
        %226 = vmatpush2.msra.mxu0 0.0
        %227 = vmatprep.subr.mxu0 0.0
        %228 = vmatpush2.msra.mxu0 0.0
        %229 = vmatprep.subr.mxu0 0.0
        %230 = vmatpush2.msra.mxu0 0.0
        %231 = vmatprep.subr.mxu0 0.0
        %232 = vmatpush2.msra.mxu0 0.0
        %233 = vmatprep.subr.mxu0 0.0
        %234 = vmatpush2.msra.mxu0 0.0
        %235 = vmatprep.subr.mxu0 0.0
        %236 = vmatpush2.msra.mxu0 0.0
        %237 = vmatprep.mubr.f32.mxu0 0.0
        %238 = vmatmul.mubr.f32.gmra.mxu0 %v171
        %v239 = vpop.f32.mrf.mxu0
        %v240 = vadd.f32 0.0, %v239
        %v241 = vpop.f32.mrf.mxu0
        %242 = vdwg.mxu0
        %v243 = vadd.f32 %v163, %v240
        %vm244 = vcmask 64512
        %245 = vst.msk [vmem:[#allocation2] sm:$0xff] %vm244, %v243
        %p246 = scmp.eq.s32.totalorder %s15, 2
        // Predicated region
        $region37: #{ensemble_average.1} parent=31 // pred_check
          %p247 = pneg %p246
        $region38: #{ensemble_average.1} parent=31 // pred_check_branch
          %249 = sbr.rel (%p247) target = $region40
        $region39: #{ensemble_average.1} parent=31 // pred_region
          %v250 = vld [vmem:[#allocation2] sm:$0xff]
          %v251 = vmul.f32 %v250, 0.33333334
          %v252 = vld [vmem:[%s2] sm:$0x1]
          %v254 = vlaneseq
          %v255 = vshrl.u32 %v254, 7
          %v256 = vsub.s32 0, %v255
          %v257 = vrot.slane %v252, %v256
          %v259 = vadd.f32 %v251, %v257
          %260 = vst.msk [vmem:[#allocation2] sm:$0xff] %vm244, %v259
        $region40: #{ensemble_average.1} parent=31 // pred_fallthru
          _
        // Predicated region
        $region41: #{ensemble_average.1} parent=31 // pred_check
          %p261 = pneg %p96
        $region42: #{ensemble_average.1} parent=31 // pred_check_branch
          %263 = sbr.rel (%p261) target = $region44
        $region43: #{ensemble_average.1} parent=31 // pred_region
          %s265 = ssub.s32 128, 128
          %266 = vsyncadd [#allocation3], %s265
          %s268 = sshll.u32 [#allocation2], 4
          %s269 = int_to_ptr.vmem [resolvable:$true] %s268
          %271 = dma.vmem_to_hbm [thread:$0]  %s269, 128, %s3, [#allocation3]
        $region44: #{ensemble_average.1} parent=31 // pred_fallthru
          _
        // Predicated region
        $region45: #{ensemble_average.1} parent=31 // pred_check
          %p272 = pneg %p96
        $region46: #{ensemble_average.1} parent=31 // pred_check_branch
          %274 = sbr.rel (%p272) target = $region48
        $region47: #{ensemble_average.1} parent=31 // pred_region
          %275 = dma.done [#allocation3], 128
        $region48: #{ensemble_average.1} parent=31 // pred_fallthru
          _
      $region32: #{ensemble_average.1} parent=5 // pred_fallthru
        _
      %p276 = scmp.le.s32.totalorder 2, %s10
      // Predicated region
      $region49: #{ensemble_average.1} parent=5 // pred_check
        %p277 = pneg %p276
      $region50: #{ensemble_average.1} parent=5 // pred_check_branch
        %279 = sbr.rel (%p277) target = $region52
      $region51: #{ensemble_average.1} parent=5 // pred_region
        %s280 = ssub.s32 %s10, 2
      $region52: #{ensemble_average.1} parent=5 // pred_fallthru
        _
    $region6: #{ensemble_average.1} parent=1 // loop_footer
      %s14 = sadd.s32 1, %s10
    $region7: #{ensemble_average.1} parent=1 // loop_footer_branch
      %9 = sbr.rel target = $region3
    $region8: #{ensemble_average.1} parent=1 // loop_exit
      _
    %281 = vsyncpa [#allocation3], 1
    %s282 = scalar_lea.sflag [#allocation3], 1
    %283 = vsyncpa %s282, 1

</llo_original>
